<compile_context>
chip_gen: v7x
topology: tpu7x:2x2x1
jax: 0.10.0
libtpu: 0.0.40
codegen_flags: <defaults>
</compile_context>

<pallas_src>
import jax
import jax.numpy as jnp
from jax.experimental import pallas as pl
from jax.experimental.pallas import tpu as pltpu


def _round_up(x, m):
    return (x + m - 1) // m * m


def _vmem_budget_bytes():
    """Per-core VMEM budget derived from the device (v5e/v6e 128 MiB, v7x 64 MiB/TC)."""
    cap = 64 * 1024 * 1024  # conservative fallback = v7x per-TC VMEM
    try:
        info = pltpu.get_tpu_info()
        cap = int(getattr(info, "vmem_capacity_bytes", cap))
    except Exception:
        pass
    # Leave headroom for Mosaic-internal scratch; never request > ~100 MiB
    # even on 128 MiB parts (per review guidance).
    return min(int(cap * 0.80), 100 * 1024 * 1024)


# --------------------------------------------------------------------------
# Pass 1: encoder  enc = sigmoid(x @ W1^T + b1), output stored in bf16.
# Grid: (batch tile i, contraction chunk c over n_item). When W1^T fits in
# VMEM the contraction axis has extent 1 and W1^T stays resident (fetched
# exactly once, single-buffered).
# --------------------------------------------------------------------------
def _encoder_kernel(x_ref, w1t_ref, b1_ref, enc_ref, acc_ref):
    c = pl.program_id(1)

    @pl.when(c == 0)
    def _():
        acc_ref[...] = jnp.zeros_like(acc_ref)

    # (tb, tc) @ (tc, k_pad) -> (tb, k_pad), f32 accumulation on the MXU.
    acc_ref[...] += jnp.dot(x_ref[...], w1t_ref[...],
                            preferred_element_type=jnp.float32)

    @pl.when(c == pl.num_programs(1) - 1)
    def _():
        enc_ref[...] = jax.nn.sigmoid(
            acc_ref[...] + b1_ref[...]).astype(enc_ref.dtype)


# --------------------------------------------------------------------------
# Pass 2: decoder  out = enc @ W2^T + b2.
# Grid: (item tile j OUTER, batch tile i INNER) -> the (k_pad, tn) W2^T tile
# index depends only on j, so each W2 tile is read from HBM exactly once and
# stays VMEM-resident while the batch sweeps underneath it.
# --------------------------------------------------------------------------
def _decoder_kernel(enc_ref, w2t_ref, b2_ref, out_ref):
    dec = jnp.dot(enc_ref[...], w2t_ref[...],
                  preferred_element_type=jnp.float32)
    out_ref[...] = (dec + b2_ref[...]).astype(out_ref.dtype)


def autorec_forward(x, w1, b1, w2, b2, *, tb=256, tn=2048,
                    compute_dtype=jnp.bfloat16, out_dtype=jnp.bfloat16):
    """AutoRec forward pass.

    x : (B, n_item) ratings; w1: (k, n_item); b1: (k,); w2: (n_item, k); b2: (n_item,)
    Returns (B, n_item) reconstruction in `out_dtype` (bf16 by default to halve
    HBM writeback; pass out_dtype=jnp.float32 to match the input dtype).
    """
    B, n_item = x.shape
    k = w1.shape[0]
    assert w1.shape == (k, n_item) and b1.shape == (k,)
    assert w2.shape == (n_item, k) and b2.shape == (n_item,)

    itemsize = jnp.dtype(compute_dtype).itemsize
    out_itemsize = jnp.dtype(out_dtype).itemsize

    # ---- tile plan & padding (pad, never fall back to untiled blocks) ----
    k_pad = _round_up(k, 128)
    tb = max(8, _round_up(min(tb, _round_up(B, 8)), 8))
    tn = max(128, _round_up(min(tn, _round_up(n_item, 128)), 128))
    B_pad = _round_up(B, tb)
    n_item_pad = _round_up(n_item, tn)

    # Zero-padding is exact: padded x columns hit zero W1^T rows; padded k
    # lanes get sigmoid(0)=0.5 but multiply zero W2^T rows; padded output
    # columns come from zero W2^T columns + zero b2 and are sliced off.
    xp = jnp.pad(x, ((0, B_pad - B), (0, n_item_pad - n_item))).astype(compute_dtype)
    w1t = jnp.pad(w1, ((0, k_pad - k), (0, n_item_pad - n_item))).T.astype(compute_dtype)
    w2t = jnp.pad(w2, ((0, n_item_pad - n_item), (0, k_pad - k))).T.astype(compute_dtype)
    b1r = jnp.pad(b1, (0, k_pad - k)).reshape(1, k_pad).astype(jnp.float32)
    b2r = jnp.pad(b2, (0, n_item_pad - n_item)).reshape(1, n_item_pad).astype(jnp.float32)

    # ---- encoder: decide whether W1^T can stay fully VMEM-resident -------
    budget = _vmem_budget_bytes()
    w1_resident_bytes = n_item_pad * k_pad * itemsize          # single-buffered
    x_resident_bytes = 2 * tb * n_item_pad * itemsize          # x tile, 2-buffered
    small_bytes = tb * k_pad * (4 + 2 * itemsize) + k_pad * 4  # acc + enc out + b1
    w1_resident = (w1_resident_bytes + x_resident_bytes + small_bytes) <= budget
    tc = n_item_pad if w1_resident else tn                     # contraction chunk

    if w1_resident:
        # Grid-invariant block -> single buffer (halves the largest VMEM tenant).
        w1_spec = pl.BlockSpec((tc, k_pad), lambda i, c: (c, 0),
                               pipeline_mode=pl.Buffered(1))
        w1_bufs, w1_reads = 1, 1
    else:
        w1_spec = pl.BlockSpec((tc, k_pad), lambda i, c: (c, 0))
        w1_bufs, w1_reads = 2, B_pad // tb
    b1_spec = pl.BlockSpec((1, k_pad), lambda i, c: (0, 0),
                           pipeline_mode=pl.Buffered(1))       # grid-invariant

    enc_grid = (B_pad // tb, n_item_pad // tc)
    enc_vmem = (2 * tb * tc * itemsize                 # x tiles (2-buffered)
                + w1_bufs * tc * k_pad * itemsize      # W1^T tiles
                + k_pad * 4                            # b1
                + 2 * tb * k_pad * itemsize            # enc output tiles
                + tb * k_pad * 4)                      # f32 accumulator scratch
    enc_limit = min(budget, max(int(enc_vmem * 1.25) + (4 << 20), 32 << 20))

    enc = pl.pallas_call(
        _encoder_kernel,
        out_shape=jax.ShapeDtypeStruct((B_pad, k_pad), compute_dtype),
        grid_spec=pltpu.PrefetchScalarGridSpec(
            num_scalar_prefetch=0,
            grid=enc_grid,
            in_specs=[
                pl.BlockSpec((tb, tc), lambda i, c: (i, c)),
                w1_spec,
                b1_spec,
            ],
            out_specs=pl.BlockSpec((tb, k_pad), lambda i, c: (i, 0)),
            scratch_shapes=[pltpu.VMEM((tb, k_pad), jnp.float32)],
        ),
        compiler_params=pltpu.CompilerParams(
            # Batch tiles are independent (megacore); contraction chunks are a
            # reduction into the enc scratch -> sequential.
            dimension_semantics=("parallel", "arbitrary"),
            vmem_limit_bytes=enc_limit,
        ),
        cost_estimate=pl.CostEstimate(
            flops=2 * B_pad * n_item_pad * k_pad,
            transcendentals=B_pad * k_pad,
            bytes_accessed=(xp.size * itemsize
                            + w1_reads * w1t.size * itemsize
                            + b1r.size * 4
                            + B_pad * k_pad * itemsize)),
    )(xp, w1t, b1r)

    # ---- decoder: j outer / i inner so W2^T is read from HBM exactly once --
    dec_grid = (n_item_pad // tn, B_pad // tb)
    dec_vmem = (2 * tb * k_pad * itemsize              # enc tiles
                + 2 * k_pad * tn * itemsize            # W2^T tiles
                + 2 * tn * 4                           # b2 tiles
                + 2 * tb * tn * out_itemsize)          # output tiles
    dec_limit = min(budget, max(int(dec_vmem * 1.25) + (4 << 20), 32 << 20))

    out_padded = pl.pallas_call(
        _decoder_kernel,
        out_shape=jax.ShapeDtypeStruct((B_pad, n_item_pad), out_dtype),
        grid_spec=pltpu.PrefetchScalarGridSpec(
            num_scalar_prefetch=0,
            grid=dec_grid,
            in_specs=[
                pl.BlockSpec((tb, k_pad), lambda j, i: (i, 0)),
                pl.BlockSpec((k_pad, tn), lambda j, i: (0, j)),
                pl.BlockSpec((1, tn), lambda j, i: (0, j)),
            ],
            out_specs=pl.BlockSpec((tb, tn), lambda j, i: (i, j)),
        ),
        compiler_params=pltpu.CompilerParams(
            # No cross-step state -> both axes independent; megacore shards the
            # outer (item-tile) axis so each core keeps its own W2 slice.
            dimension_semantics=("parallel", "parallel"),
            vmem_limit_bytes=dec_limit,
        ),
        cost_estimate=pl.CostEstimate(
            flops=2 * B_pad * n_item_pad * k_pad,
            transcendentals=0,
            bytes_accessed=(B_pad * k_pad * itemsize * (n_item_pad // tn)  # enc re-read per j
                            + w2t.size * itemsize                          # W2 read once
                            + b2r.size * 4
                            + B_pad * n_item_pad * out_itemsize)),
    )(enc, w2t, b2r)

    return out_padded[:B, :n_item]


def init_params(key, n_item, k, dtype=jnp.float32):
    """Deterministic init mimicking PyTorch nn.Linear defaults (U(+-1/sqrt(fan_in)))."""
    k1, k2, k3, k4 = jax.random.split(key, 4)
    bnd1 = 1.0 / jnp.sqrt(jnp.float32(n_item))
    bnd2 = 1.0 / jnp.sqrt(jnp.float32(k))
    w1 = jax.random.uniform(k1, (k, n_item), dtype, -bnd1, bnd1)  # encoder weight
    b1 = jax.random.uniform(k2, (k,), dtype, -bnd1, bnd1)         # encoder bias
    w2 = jax.random.uniform(k3, (n_item, k), dtype, -bnd2, bnd2)  # decoder weight
    b2 = jax.random.uniform(k4, (n_item,), dtype, -bnd2, bnd2)    # decoder bias
    return w1, b1, w2, b2


# TODO(synk): AutoRec.loss (masked MSE + L2 over optimizer params, RMSE) is a
# training utility, not part of forward(); not implemented as a kernel.

if __name__ == "__main__":
    # Small-but-representative AutoRec shapes: a mini-batch of user rating
    # vectors over n_item items, bottleneck k=10 (the module default).
    batch, n_item, k = 200, 1000, 10
    key = jax.random.PRNGKey(0)
    kx, kp = jax.random.split(key)
    x = jax.random.normal(kx, (batch, n_item), jnp.float32)
    w1, b1, w2, b2 = init_params(kp, n_item, k)

    # Small tile overrides purely so these toy shapes exercise multi-tile grids
    # and every padding path (B 200->256, n_item 1000->1024, k 10->128).
    # Production defaults are tb=256 / tn=2048 (full MXU M dim, amortized
    # per-grid-step overhead).
    out = autorec_forward(x, w1, b1, w2, b2, tb=64, tn=256)
    out = jax.block_until_ready(out)
    assert out.shape == (batch, n_item)
    out_f32 = out.astype(jnp.float32)

    # Reference with the same bf16-operand / f32-accumulate / bf16-enc recipe.
    xb, w1b, w2b = (a.astype(jnp.bfloat16) for a in (x, w1, w2))
    h_ref = jnp.dot(xb, w1b.T, preferred_element_type=jnp.float32) + b1
    enc_ref = jax.nn.sigmoid(h_ref).astype(jnp.bfloat16)
    dec_ref = jnp.dot(enc_ref, w2b.T, preferred_element_type=jnp.float32) + b2
    assert jnp.allclose(out_f32, dec_ref, atol=2e-2, rtol=2e-2)

    # Full-precision semantic sanity check (loose: matmuls/output run in bf16).
    dec_f32 = jax.nn.sigmoid(x @ w1.T + b1) @ w2.T + b2
    assert jnp.allclose(out_f32, dec_f32, atol=7e-2, rtol=7e-2)

    print("KERNEL_OK")
</pallas_src>

<mosaic_0001>
module attributes {stable_mosaic.version = 11 : i64} {
  func.func @_encoder_kernel(%arg0: i32, %arg1: i32, %arg2: memref<64x1024xbf16, #tpu.memory_space<vmem>>, %arg3: memref<1024x128xbf16, #tpu.memory_space<vmem>>, %arg4: memref<1x128xf32, #tpu.memory_space<vmem>>, %arg5: memref<64x128xbf16, #tpu.memory_space<vmem>>, %arg6: memref<64x128xf32, #tpu.memory_space<vmem>>) attributes {dimension_semantics = [#tpu.dimension_semantics<parallel>, #tpu.dimension_semantics<arbitrary>], iteration_bounds = array<i64: 4, 1>, scalar_prefetch = 0 : i64, scratch_operands = 1 : i64, tpu.core_type = #tpu.core_type<tc>, window_params = [{transform_indices = @transform_0, window_bounds = array<i64: 64, 1024>}, {pipeline_mode = #tpu.pipeline_mode<synchronous>, transform_indices = @transform_1, window_bounds = array<i64: 1024, 128>}, {pipeline_mode = #tpu.pipeline_mode<synchronous>, transform_indices = @transform_2, window_bounds = array<i64: 1, 128>}, {transform_indices = @transform_3, window_bounds = array<i64: 64, 128>}]} {
    %c0_i32 = arith.constant 0 : i32
    %0 = arith.cmpi eq, %arg1, %c0_i32 : i32
    %1 = arith.extui %0 : i1 to i32
    %c0_i32_0 = arith.constant 0 : i32
    %2 = arith.cmpi ne, %1, %c0_i32_0 : i32
    scf.if %2 {
      %cst_10 = arith.constant 0.000000e+00 : f32
      %12 = vector.broadcast %cst_10 : f32 to vector<64x128xf32>
      %c0_11 = arith.constant 0 : index
      %c0_12 = arith.constant 0 : index
      %13 = vector.load %arg6[%c0_11, %c0_12] : memref<64x128xf32, #tpu.memory_space<vmem>>, vector<64x128xf32>
      tpu.vector_store %arg6[%c0_11, %c0_12], %12 {strides = array<i32>} : memref<64x128xf32, #tpu.memory_space<vmem>>, vector<64x128xf32>,
    } else {
    }
    %c0 = arith.constant 0 : index
    %c0_1 = arith.constant 0 : index
    %3 = vector.load %arg6[%c0, %c0_1] : memref<64x128xf32, #tpu.memory_space<vmem>>, vector<64x128xf32>
    %c0_2 = arith.constant 0 : index
    %c0_3 = arith.constant 0 : index
    %4 = vector.load %arg2[%c0_2, %c0_3] : memref<64x1024xbf16, #tpu.memory_space<vmem>>, vector<64x1024xbf16>
    %c0_4 = arith.constant 0 : index
    %c0_5 = arith.constant 0 : index
    %5 = vector.load %arg3[%c0_4, %c0_5] : memref<1024x128xbf16, #tpu.memory_space<vmem>>, vector<1024x128xbf16>
    %cst = arith.constant dense<0.000000e+00> : vector<64x128xf32>
    %6 = tpu.matmul %4, %5, %cst {dimension_numbers = #tpu.dot_dimension_numbers<[1], [0], [0], [1], [0, 0, 1, 1], [], []>} : vector<64x1024xbf16>, vector<1024x128xbf16>, vector<64x128xf32> -> vector<64x128xf32>
    %7 = arith.addf %3, %6 : vector<64x128xf32>
    %c0_6 = arith.constant 0 : index
    %c0_7 = arith.constant 0 : index
    %8 = vector.load %arg6[%c0_6, %c0_7] : memref<64x128xf32, #tpu.memory_space<vmem>>, vector<64x128xf32>
    tpu.vector_store %arg6[%c0_6, %c0_7], %7 {strides = array<i32>} : memref<64x128xf32, #tpu.memory_space<vmem>>, vector<64x128xf32>,
    %c0_i32_8 = arith.constant 0 : i32
    %9 = arith.cmpi eq, %arg1, %c0_i32_8 : i32
    %10 = arith.extui %9 : i1 to i32
    %c0_i32_9 = arith.constant 0 : i32
    %11 = arith.cmpi ne, %10, %c0_i32_9 : i32
    scf.if %11 {
      %c0_10 = arith.constant 0 : index
      %c0_11 = arith.constant 0 : index
      %12 = vector.load %arg6[%c0_10, %c0_11] : memref<64x128xf32, #tpu.memory_space<vmem>>, vector<64x128xf32>
      %c0_12 = arith.constant 0 : index
      %c0_13 = arith.constant 0 : index
      %13 = vector.load %arg4[%c0_12, %c0_13] : memref<1x128xf32, #tpu.memory_space<vmem>>, vector<1x128xf32>
      %14 = vector.broadcast %13 : vector<1x128xf32> to vector<64x128xf32>
      %15 = arith.addf %12, %14 : vector<64x128xf32>
      %16 = arith.negf %15 : vector<64x128xf32>
      %17 = math.exp %16 : vector<64x128xf32>
      %cst_14 = arith.constant 1.000000e+00 : f32
      %18 = vector.broadcast %cst_14 : f32 to vector<64x128xf32>
      %19 = arith.addf %18, %17 : vector<64x128xf32>
      %20 = arith.divf %18, %19 : vector<64x128xf32>
      %21 = arith.truncf %20 : vector<64x128xf32> to vector<64x128xbf16>
      %c0_15 = arith.constant 0 : index
      %c0_16 = arith.constant 0 : index
      %22 = vector.load %arg5[%c0_15, %c0_16] : memref<64x128xbf16, #tpu.memory_space<vmem>>, vector<64x128xbf16>
      tpu.vector_store %arg5[%c0_15, %c0_16], %21 {strides = array<i32>} : memref<64x128xbf16, #tpu.memory_space<vmem>>, vector<64x128xbf16>,
    } else {
    }
    return
  }
  func.func @transform_0(%arg0: i32, %arg1: i32) -> (i32, i32) {
    %c0_i32 = arith.constant 0 : i32
    return %arg0, %arg1 : i32, i32
  }
  func.func @transform_1(%arg0: i32, %arg1: i32) -> (i32, i32) {
    %c0_i32 = arith.constant 0 : i32
    %c0_i32_0 = arith.constant 0 : i32
    return %arg1, %c0_i32 : i32, i32
  }
  func.func @transform_2(%arg0: i32, %arg1: i32) -> (i32, i32) {
    %c0_i32 = arith.constant 0 : i32
    %c0_i32_0 = arith.constant 0 : i32
    %c0_i32_1 = arith.constant 0 : i32
    return %c0_i32, %c0_i32_0 : i32, i32
  }
  func.func @transform_3(%arg0: i32, %arg1: i32) -> (i32, i32) {
    %c0_i32 = arith.constant 0 : i32
    %c0_i32_0 = arith.constant 0 : i32
    return %arg0, %c0_i32 : i32, i32
  }
}

</mosaic_0001>

<llo_original>
// kernel: tpu_custom_call.1
$region0: #{tpu_custom_call.1}
  #allocation0 [shape = 'u32[]', space=smem, size = 0x4, offset = 0x4, fixed_abs, tag = 'smem constant byte address 0x4 - core index']
  #allocation1 [shape = 'u32[144,128]{1,0:T(1,128)}', space=vmem, size = 0x12000, scoped, tag = 'internal scratch']
  #allocation2 [shape = 'f32[64,128]{1,0:T(8,128)}', space=vmem, size = 0x8000, scoped, tag = 'scratch operand']
  %s0 = inlined_call_operand.hbm [shape: bf16[256,1024], index: 0, kind: input, shape index: {}]
  %s1 = inlined_call_operand.hbm [shape: bf16[1024,128], index: 1, kind: input, shape index: {}]
  %s2 = inlined_call_operand.vmem [shape: f32[1,128], index: 2, kind: input, shape index: {}]
  %s3 = inlined_call_operand.hbm [shape: bf16[256,128], index: 3, kind: output, shape index: {}]
  %s4 = sld [smem:[#allocation0]]
  $region61: #{tpu_custom_call.1} parent=0
    _
  %s6 = ssub.s32 1, %s4
  %s7 = scalar_select 0, %s6, %s4
  $region1: #{tpu_custom_call.1} parent=0
    #allocation3 [shape = 'u8[262144]{0}', space=vmem, size = 0x40000, scoped, tag = 'input window, operand 0']
    #allocation4 [shape = 's32[2]{0}', space=sflag, size = 0x8, scoped, tag = 'scoped memory for tpu_custom_call.1']
    #allocation5 [shape = 's32[2]{0}', space=sflag, size = 0x8, scoped, tag = 'scoped memory for tpu_custom_call.1']
    #allocation6 [shape = 'u8[262144]{0}', space=vmem, size = 0x40000, scoped, tag = 'input window, operand 1, single buffered']
    #allocation7 [shape = 's32[1]{0}', space=sflag, size = 0x4, scoped, tag = 'scoped memory for tpu_custom_call.1']
    #allocation8 [shape = 'u8[32768]{0}', space=vmem, size = 0x8000, scoped, tag = 'output window, operand 0']
    %8 = vsyncpa [#allocation4], 0
    %s9 = scalar_lea.sflag [#allocation4], 1
    %10 = vsyncpa %s9, 0
    %11 = vsyncpa [#allocation7], 0
    %12 = vsyncpa [#allocation5], 0
    %s13 = scalar_lea.sflag [#allocation5], 1
    %14 = vsyncpa %s13, 0
    loop: start=0, step=1, limit=6
    $region2: #{tpu_custom_call.1} parent=1 // loop_pre_header
      _
    $region3: #{tpu_custom_call.1} parent=1 // loop_header
      %s16 = sphi 0, %s20
      %p17 = scmp.ge.s32.totalorder %s16, 6
      %s23 = sphi 0, %s35
      %s24 = sphi 0, %s31
      %s25 = sphi 0, %s23
      %s26 = sphi 0, %s24
      %s27 = sphi 0, %s25
      %s28 = sphi 0, %s26
      %s40 = sphi 0, %s42
      %s43 = sphi 0, %s40
      %s44 = sphi 0, %s43
      %s60 = sphi 0, %s44
      %s66 = sphi 0, %s68
      %s69 = sphi 0, %s66
      %s70 = sphi 0, %s69
      %s86 = sphi 0, %s70
      %s90 = sphi 0, %s90
      %s92 = sphi 0, %s90
      %s93 = sphi 0, %s92
      %s107 = sphi 0, %s93
      %s113 = sphi 0, %s115
      %s116 = sphi 0, %s113
      %s117 = sphi 0, %s116
      %s133 = sphi 0, %s117
    $region4: #{tpu_custom_call.1} parent=1 // loop_header_branch
      %19 = sbr.rel (%p17) target = $region8
    $region5: #{tpu_custom_call.1} parent=1 // loop_body
      %s21 = ssub.s32 %s16, 1
      %s22 = ssub.s32 %s16, 2
      %s29 = sadd.s32 1, %s24
      %p30 = scmp.ge.s32.totalorder %s29, 1
      %s31 = scalar_select %p30, 0, %s29
      %s32 = sadd.s32 1, %s23
      %s33 = scalar_select %p30, %s32, %s23
      %p34 = scmp.ge.s32.totalorder %s33, 4
      %s35 = scalar_select %p34, 0, %s33
      %s36 = ssub.s32 %s23, %s35
      %s37 = ssub.s32 %s24, %s31
      %s38 = sor.u32 %s36, %s37
      %p39 = scmp.eq.s32.totalorder %s38, 0
      %s41 = sadd.s32 %s40, 1
      %s42 = scalar_select %p39, %s40, %s41
      %p45 = pneg %p39
      %p46 = scmp.eq.s32.totalorder %s16, 3
      %p47 = por %p45, %p46
      %p48 = scmp.ne.s32.totalorder %s40, %s43
      %p49 = scmp.eq.s32.totalorder %s16, 0
      %p50 = por %p48, %p49
      %p51 = scmp.ne.s32.totalorder %s40, %s43
      %p52 = scmp.eq.s32.totalorder %s21, 3
      %p53 = por %p51, %p52
      %p54 = scmp.ne.s32.totalorder %s43, %s44
      %p55 = scmp.eq.s32.totalorder %s21, 0
      %p56 = por %p54, %p55
      %p57 = scmp.ne.s32.totalorder %s43, %s44
      %p58 = scmp.eq.s32.totalorder %s22, 3
      %p59 = por %p57, %p58
      %p61 = scmp.ne.s32.totalorder %s44, %s60
      %p62 = scmp.eq.s32.totalorder %s22, 0
      %p63 = por %p61, %p62
      %s64 = ssub.s32 %s24, %s31
      %p65 = scmp.eq.s32.totalorder %s64, 0
      %s67 = sadd.s32 %s66, 1
      %s68 = scalar_select %p65, %s66, %s67
      %p71 = pneg %p65
      %p72 = scmp.eq.s32.totalorder %s16, 3
      %p73 = por %p71, %p72
      %p74 = scmp.ne.s32.totalorder %s66, %s69
      %p75 = scmp.eq.s32.totalorder %s16, 0
      %p76 = por %p74, %p75
      %p77 = scmp.ne.s32.totalorder %s66, %s69
      %p78 = scmp.eq.s32.totalorder %s21, 3
      %p79 = por %p77, %p78
      %p80 = scmp.ne.s32.totalorder %s69, %s70
      %p81 = scmp.eq.s32.totalorder %s21, 0
      %p82 = por %p80, %p81
      %p83 = scmp.ne.s32.totalorder %s69, %s70
      %p84 = scmp.eq.s32.totalorder %s22, 3
      %p85 = por %p83, %p84
      %p87 = scmp.ne.s32.totalorder %s70, %s86
      %p88 = scmp.eq.s32.totalorder %s22, 0
      %p89 = por %p87, %p88
      %s91 = sadd.s32 %s90, 1
      %p94 = scmp.eq.s32.totalorder %s16, 3
      %p95 = scmp.ne.s32.totalorder %s90, %s92
      %p96 = scmp.eq.s32.totalorder %s16, 0
      %p97 = por %p95, %p96
      %p98 = scmp.ne.s32.totalorder %s90, %s92
      %p99 = scmp.eq.s32.totalorder %s21, 3
      %p100 = por %p98, %p99
      %p101 = scmp.ne.s32.totalorder %s92, %s93
      %p102 = scmp.eq.s32.totalorder %s21, 0
      %p103 = por %p101, %p102
      %p104 = scmp.ne.s32.totalorder %s92, %s93
      %p105 = scmp.eq.s32.totalorder %s22, 3
      %p106 = por %p104, %p105
      %p108 = scmp.ne.s32.totalorder %s93, %s107
      %p109 = scmp.eq.s32.totalorder %s22, 0
      %p110 = por %p108, %p109
      %s111 = ssub.s32 %s23, %s35
      %p112 = scmp.eq.s32.totalorder %s111, 0
      %s114 = sadd.s32 %s113, 1
      %s115 = scalar_select %p112, %s113, %s114
      %p118 = pneg %p112
      %p119 = scmp.eq.s32.totalorder %s16, 3
      %p120 = por %p118, %p119
      %p121 = scmp.ne.s32.totalorder %s113, %s116
      %p122 = scmp.eq.s32.totalorder %s16, 0
      %p123 = por %p121, %p122
      %p124 = scmp.ne.s32.totalorder %s113, %s116
      %p125 = scmp.eq.s32.totalorder %s21, 3
      %p126 = por %p124, %p125
      %p127 = scmp.ne.s32.totalorder %s116, %s117
      %p128 = scmp.eq.s32.totalorder %s21, 0
      %p129 = por %p127, %p128
      %p130 = scmp.ne.s32.totalorder %s116, %s117
      %p131 = scmp.eq.s32.totalorder %s22, 3
      %p132 = por %p130, %p131
      %p134 = scmp.ne.s32.totalorder %s117, %s133
      %p135 = scmp.eq.s32.totalorder %s22, 0
      %p136 = por %p134, %p135
      %p137 = scmp.le.s32.totalorder 1, %s16
      %p138 = scmp.lt.s32.totalorder %s16, 5
      %p139 = pnand %p137, %p138
      %p140 = pneg %p139
      // Predicated region
      $region9: #{tpu_custom_call.1} parent=5 // pred_check
        _
      $region10: #{tpu_custom_call.1} parent=5 // pred_check_branch
        %142 = sbr.rel (%p139) target = $region12
      $region11: #{tpu_custom_call.1} parent=5 // pred_region
        %s143 = ssub.s32 %s16, 1
        // Predicated region
        $region13: #{tpu_custom_call.1} parent=11 // pred_check
          %p144 = pneg %p82
        $region14: #{tpu_custom_call.1} parent=11 // pred_check_branch
          %146 = sbr.rel (%p144) target = $region16
        $region15: #{tpu_custom_call.1} parent=11 // pred_region
          %s147 = smul.u32 128, %s26
          %s149 = ssub.s32 8192, 8192
          %150 = vsyncadd [#allocation7], %s149
          %s151 = smul.addr %s147, 64
          %s152 = scalar_lea.hbm %s1, %s151
          %s153 = sshll.u32 [#allocation6], 4
          %s154 = int_to_ptr.vmem [resolvable:$true] %s153
          %159 = dma.hbm_to_vmem [thread:$0]  %s152, 8192, %s154, [#allocation7], 64, 64, 4
        $region16: #{tpu_custom_call.1} parent=11 // pred_fallthru
          _
        // Predicated region
        $region17: #{tpu_custom_call.1} parent=11 // pred_check
          %p160 = pneg %p103
        $region18: #{tpu_custom_call.1} parent=11 // pred_check_branch
          %162 = sbr.rel (%p160) target = $region20
        $region19: #{tpu_custom_call.1} parent=11 // pred_region
          _
        $region20: #{tpu_custom_call.1} parent=11 // pred_fallthru
          _
      $region12: #{tpu_custom_call.1} parent=5 // pred_fallthru
        _
      %p163 = scmp.lt.s32.totalorder %s16, 4
      // Predicated region
      $region21: #{tpu_custom_call.1} parent=5 // pred_check
        %p164 = pneg %p163
      $region22: #{tpu_custom_call.1} parent=5 // pred_check_branch
        %166 = sbr.rel (%p164) target = $region24
      $region23: #{tpu_custom_call.1} parent=5 // pred_region
        // Predicated region
        $region25: #{tpu_custom_call.1} parent=23 // pred_check
          %p167 = pneg %p50
        $region26: #{tpu_custom_call.1} parent=23 // pred_check_branch
          %169 = sbr.rel (%p167) target = $region28
        $region27: #{tpu_custom_call.1} parent=23 // pred_region
          %s170 = sand.u32 %s40, 1
          %s171 = scalar_lea.sflag [#allocation4], %s170
          %s172 = sand.u32 %s40, 1
          %s173 = smul.addr %s172, 256
          %s174 = scalar_lea.vmem [#allocation3], %s173
          %s175 = smul.u32 8, %s23
          %s176 = smul.u32 8, %s24
          %s178 = ssub.s32 4096, 4096
          %179 = vsyncadd %s171, %s178
          %s180 = smul.addr %s175, 8
          %s181 = sadd.s32 %s176, %s180
          %s182 = smul.addr %s181, 64
          %s183 = scalar_lea.hbm %s0, %s182
          %s184 = sshll.u32 %s174, 4
          %s185 = int_to_ptr.vmem [resolvable:$true] %s184
          %190 = dma.hbm_to_vmem [thread:$0]  %s183, 4096, %s185, %s171, 512, 512, 32
        $region28: #{tpu_custom_call.1} parent=23 // pred_fallthru
          _
      $region24: #{tpu_custom_call.1} parent=5 // pred_fallthru
        _
      %p191 = scmp.le.s32.totalorder 1, %s16
      %p192 = scmp.lt.s32.totalorder %s16, 5
      %p193 = pnand %p191, %p192
      %p194 = pneg %p193
      // Predicated region
      $region29: #{tpu_custom_call.1} parent=5 // pred_check
        _
      $region30: #{tpu_custom_call.1} parent=5 // pred_check_branch
        %196 = sbr.rel (%p193) target = $region32
      $region31: #{tpu_custom_call.1} parent=5 // pred_region
        %s197 = ssub.s32 %s16, 1
        %s198 = sand.u32 %s43, 1
        %s199 = scalar_lea.sflag [#allocation4], %s198
        %s200 = sand.u32 %s43, 1
        %s201 = smul.addr %s200, 256
        %s202 = scalar_lea.vmem [#allocation3], %s201
        // Predicated region
        $region33: #{tpu_custom_call.1} parent=31 // pred_check
          %p203 = pneg %p56
        $region34: #{tpu_custom_call.1} parent=31 // pred_check_branch
          %205 = sbr.rel (%p203) target = $region36
        $region35: #{tpu_custom_call.1} parent=31 // pred_region
          %206 = dma.done %s199, 4096
        $region36: #{tpu_custom_call.1} parent=31 // pred_fallthru
          _
        // Predicated region
        $region37: #{tpu_custom_call.1} parent=31 // pred_check
          %p207 = pneg %p82
        $region38: #{tpu_custom_call.1} parent=31 // pred_check_branch
          %209 = sbr.rel (%p207) target = $region40
        $region39: #{tpu_custom_call.1} parent=31 // pred_region
          %210 = dma.done [#allocation7], 8192
        $region40: #{tpu_custom_call.1} parent=31 // pred_fallthru
          _
        %s211 = sand.u32 %s43, 1
        %s212 = scalar_lea.sflag [#allocation4], %s211
        %s213 = sand.u32 %s43, 1
        %s214 = smul.addr %s213, 256
        %s215 = scalar_lea.vmem [#allocation3], %s214
        %p216 = pneg %p56
        %p217 = pneg %p53
        %p218 = pneg %p82
        %p219 = pneg %p79
        %p220 = pneg %p103
        %p221 = pneg %p100
        %p222 = pneg %p129
        %p223 = pneg %p126
        %s224 = sand.u32 %s116, 1
        %s225 = scalar_lea.sflag [#allocation5], %s224
        %s226 = sand.u32 %s116, 1
        %s227 = smul.addr %s226, 32
        %s228 = scalar_lea.vmem [#allocation8], %s227
        %s229 = smul.u32 8, %s25
        %s230 = smul.u32 8, %s26
        %s231 = smul.u32 128, %s26
        %s232 = smul.u32 8, %s25
        %p234 = scmp.eq.s32.totalorder %s26, 0
        // Predicated region
        $region41: #{tpu_custom_call.1} parent=31 // pred_check
          %p235 = pneg %p234
        $region42: #{tpu_custom_call.1} parent=31 // pred_check_branch
          %237 = sbr.rel (%p235) target = $region44
        $region43: #{tpu_custom_call.1} parent=31 // pred_region
          %238 = vst [vmem:[#allocation2] sm:$0xff] 0.0
          %239 = vst [vmem:[#allocation2 + $0x8] sm:$0xff] 0.0
          %240 = vst [vmem:[#allocation2 + $0x10] sm:$0xff] 0.0
          %241 = vst [vmem:[#allocation2 + $0x18] sm:$0xff] 0.0
          %242 = vst [vmem:[#allocation2 + $0x20] sm:$0xff] 0.0
          %243 = vst [vmem:[#allocation2 + $0x28] sm:$0xff] 0.0
          %244 = vst [vmem:[#allocation2 + $0x30] sm:$0xff] 0.0
          %245 = vst [vmem:[#allocation2 + $0x38] sm:$0xff] 0.0
        $region44: #{tpu_custom_call.1} parent=31 // pred_fallthru
          _
        %v246 = vld [vmem:[#allocation2] sm:$0xff]
        %v247 = vld [vmem:[#allocation2 + $0x8] sm:$0xff]
        %v248 = vld [vmem:[#allocation2 + $0x10] sm:$0xff]
        %v249 = vld [vmem:[#allocation2 + $0x18] sm:$0xff]
        %v250 = vld [vmem:[#allocation2 + $0x20] sm:$0xff]
        %v251 = vld [vmem:[#allocation2 + $0x28] sm:$0xff]
        %v252 = vld [vmem:[#allocation2 + $0x30] sm:$0xff]
        %v253 = vld [vmem:[#allocation2 + $0x38] sm:$0xff]
        %v254 = vld [vmem:[%s202] sm:$0xff]
        %v255 = vld [vmem:[%s202 + $0x8] sm:$0xff]
        %v256 = vld [vmem:[%s202 + $0x10] sm:$0xff]
        %v257 = vld [vmem:[%s202 + $0x18] sm:$0xff]
        %v258 = vld [vmem:[%s202 + $0x20] sm:$0xff]
        %v259 = vld [vmem:[%s202 + $0x28] sm:$0xff]
        %v260 = vld [vmem:[%s202 + $0x30] sm:$0xff]
        %v261 = vld [vmem:[%s202 + $0x38] sm:$0xff]
        %v262 = vld [vmem:[%s202 + $0x40] sm:$0xff]
        %v263 = vld [vmem:[%s202 + $0x48] sm:$0xff]
        %v264 = vld [vmem:[%s202 + $0x50] sm:$0xff]
        %v265 = vld [vmem:[%s202 + $0x58] sm:$0xff]
        %v266 = vld [vmem:[%s202 + $0x60] sm:$0xff]
        %v267 = vld [vmem:[%s202 + $0x68] sm:$0xff]
        %v268 = vld [vmem:[%s202 + $0x70] sm:$0xff]
        %v269 = vld [vmem:[%s202 + $0x78] sm:$0xff]
        %v270 = vld [vmem:[%s202 + $0x80] sm:$0xff]
        %v271 = vld [vmem:[%s202 + $0x88] sm:$0xff]
        %v272 = vld [vmem:[%s202 + $0x90] sm:$0xff]
        %v273 = vld [vmem:[%s202 + $0x98] sm:$0xff]
        %v274 = vld [vmem:[%s202 + $0xa0] sm:$0xff]
        %v275 = vld [vmem:[%s202 + $0xa8] sm:$0xff]
        %v276 = vld [vmem:[%s202 + $0xb0] sm:$0xff]
        %v277 = vld [vmem:[%s202 + $0xb8] sm:$0xff]
        %v278 = vld [vmem:[%s202 + $0xc0] sm:$0xff]
        %v279 = vld [vmem:[%s202 + $0xc8] sm:$0xff]
        %v280 = vld [vmem:[%s202 + $0xd0] sm:$0xff]
        %v281 = vld [vmem:[%s202 + $0xd8] sm:$0xff]
        %v282 = vld [vmem:[%s202 + $0xe0] sm:$0xff]
        %v283 = vld [vmem:[%s202 + $0xe8] sm:$0xff]
        %v284 = vld [vmem:[%s202 + $0xf0] sm:$0xff]
        %v285 = vld [vmem:[%s202 + $0xf8] sm:$0xff]
        %v286 = vld [vmem:[#allocation6] sm:$0xf]
        %v287 = vld [vmem:[#allocation6 + $0x4] sm:$0xf]
        %v288 = vld [vmem:[#allocation6 + $0x8] sm:$0xf]
        %v289 = vld [vmem:[#allocation6 + $0xc] sm:$0xf]
        %v290 = vld [vmem:[#allocation6 + $0x10] sm:$0xf]
        %v291 = vld [vmem:[#allocation6 + $0x14] sm:$0xf]
        %v292 = vld [vmem:[#allocation6 + $0x18] sm:$0xf]
        %v293 = vld [vmem:[#allocation6 + $0x1c] sm:$0xf]
        %v294 = vld [vmem:[#allocation6 + $0x20] sm:$0xf]
        %v295 = vld [vmem:[#allocation6 + $0x24] sm:$0xf]
        %v296 = vld [vmem:[#allocation6 + $0x28] sm:$0xf]
        %v297 = vld [vmem:[#allocation6 + $0x2c] sm:$0xf]
        %v298 = vld [vmem:[#allocation6 + $0x30] sm:$0xf]
        %v299 = vld [vmem:[#allocation6 + $0x34] sm:$0xf]
        %v300 = vld [vmem:[#allocation6 + $0x38] sm:$0xf]
        %v301 = vld [vmem:[#allocation6 + $0x3c] sm:$0xf]
        %v302 = vld [vmem:[#allocation6 + $0x40] sm:$0xf]
        %v303 = vld [vmem:[#allocation6 + $0x44] sm:$0xf]
        %v304 = vld [vmem:[#allocation6 + $0x48] sm:$0xf]
        %v305 = vld [vmem:[#allocation6 + $0x4c] sm:$0xf]
        %v306 = vld [vmem:[#allocation6 + $0x50] sm:$0xf]
        %v307 = vld [vmem:[#allocation6 + $0x54] sm:$0xf]
        %v308 = vld [vmem:[#allocation6 + $0x58] sm:$0xf]
        %v309 = vld [vmem:[#allocation6 + $0x5c] sm:$0xf]
        %v310 = vld [vmem:[#allocation6 + $0x60] sm:$0xf]
        %v311 = vld [vmem:[#allocation6 + $0x64] sm:$0xf]
        %v312 = vld [vmem:[#allocation6 + $0x68] sm:$0xf]
        %v313 = vld [vmem:[#allocation6 + $0x6c] sm:$0xf]
        %v314 = vld [vmem:[#allocation6 + $0x70] sm:$0xf]
        %v315 = vld [vmem:[#allocation6 + $0x74] sm:$0xf]
        %v316 = vld [vmem:[#allocation6 + $0x78] sm:$0xf]
        %v317 = vld [vmem:[#allocation6 + $0x7c] sm:$0xf]
        %v318 = vld [vmem:[#allocation6 + $0x80] sm:$0xf]
        %v319 = vld [vmem:[#allocation6 + $0x84] sm:$0xf]
        %v320 = vld [vmem:[#allocation6 + $0x88] sm:$0xf]
        %v321 = vld [vmem:[#allocation6 + $0x8c] sm:$0xf]
        %v322 = vld [vmem:[#allocation6 + $0x90] sm:$0xf]
        %v323 = vld [vmem:[#allocation6 + $0x94] sm:$0xf]
        %v324 = vld [vmem:[#allocation6 + $0x98] sm:$0xf]
        %v325 = vld [vmem:[#allocation6 + $0x9c] sm:$0xf]
        %v326 = vld [vmem:[#allocation6 + $0xa0] sm:$0xf]
        %v327 = vld [vmem:[#allocation6 + $0xa4] sm:$0xf]
        %v328 = vld [vmem:[#allocation6 + $0xa8] sm:$0xf]
        %v329 = vld [vmem:[#allocation6 + $0xac] sm:$0xf]
        %v330 = vld [vmem:[#allocation6 + $0xb0] sm:$0xf]
        %v331 = vld [vmem:[#allocation6 + $0xb4] sm:$0xf]
        %v332 = vld [vmem:[#allocation6 + $0xb8] sm:$0xf]
        %v333 = vld [vmem:[#allocation6 + $0xbc] sm:$0xf]
        %v334 = vld [vmem:[#allocation6 + $0xc0] sm:$0xf]
        %v335 = vld [vmem:[#allocation6 + $0xc4] sm:$0xf]
        %v336 = vld [vmem:[#allocation6 + $0xc8] sm:$0xf]
        %v337 = vld [vmem:[#allocation6 + $0xcc] sm:$0xf]
        %v338 = vld [vmem:[#allocation6 + $0xd0] sm:$0xf]
        %v339 = vld [vmem:[#allocation6 + $0xd4] sm:$0xf]
        %v340 = vld [vmem:[#allocation6 + $0xd8] sm:$0xf]
        %v341 = vld [vmem:[#allocation6 + $0xdc] sm:$0xf]
        %v342 = vld [vmem:[#allocation6 + $0xe0] sm:$0xf]
        %v343 = vld [vmem:[#allocation6 + $0xe4] sm:$0xf]
        %v344 = vld [vmem:[#allocation6 + $0xe8] sm:$0xf]
        %v345 = vld [vmem:[#allocation6 + $0xec] sm:$0xf]
        %v346 = vld [vmem:[#allocation6 + $0xf0] sm:$0xf]
        %v347 = vld [vmem:[#allocation6 + $0xf4] sm:$0xf]
        %v348 = vld [vmem:[#allocation6 + $0xf8] sm:$0xf]
        %v349 = vld [vmem:[#allocation6 + $0xfc] sm:$0xf]
        %v350 = vld [vmem:[#allocation6 + $0x100] sm:$0xf]
        %v351 = vld [vmem:[#allocation6 + $0x104] sm:$0xf]
        %v352 = vld [vmem:[#allocation6 + $0x108] sm:$0xf]
        %v353 = vld [vmem:[#allocation6 + $0x10c] sm:$0xf]
        %v354 = vld [vmem:[#allocation6 + $0x110] sm:$0xf]
        %v355 = vld [vmem:[#allocation6 + $0x114] sm:$0xf]
        %v356 = vld [vmem:[#allocation6 + $0x118] sm:$0xf]
        %v357 = vld [vmem:[#allocation6 + $0x11c] sm:$0xf]
        %v358 = vld [vmem:[#allocation6 + $0x120] sm:$0xf]
        %v359 = vld [vmem:[#allocation6 + $0x124] sm:$0xf]
        %v360 = vld [vmem:[#allocation6 + $0x128] sm:$0xf]
        %v361 = vld [vmem:[#allocation6 + $0x12c] sm:$0xf]
        %v362 = vld [vmem:[#allocation6 + $0x130] sm:$0xf]
        %v363 = vld [vmem:[#allocation6 + $0x134] sm:$0xf]
        %v364 = vld [vmem:[#allocation6 + $0x138] sm:$0xf]
        %v365 = vld [vmem:[#allocation6 + $0x13c] sm:$0xf]
        %v366 = vld [vmem:[#allocation6 + $0x140] sm:$0xf]
        %v367 = vld [vmem:[#allocation6 + $0x144] sm:$0xf]
        %v368 = vld [vmem:[#allocation6 + $0x148] sm:$0xf]
        %v369 = vld [vmem:[#allocation6 + $0x14c] sm:$0xf]
        %v370 = vld [vmem:[#allocation6 + $0x150] sm:$0xf]
        %v371 = vld [vmem:[#allocation6 + $0x154] sm:$0xf]
        %v372 = vld [vmem:[#allocation6 + $0x158] sm:$0xf]
        %v373 = vld [vmem:[#allocation6 + $0x15c] sm:$0xf]
        %v374 = vld [vmem:[#allocation6 + $0x160] sm:$0xf]
        %v375 = vld [vmem:[#allocation6 + $0x164] sm:$0xf]
        %v376 = vld [vmem:[#allocation6 + $0x168] sm:$0xf]
        %v377 = vld [vmem:[#allocation6 + $0x16c] sm:$0xf]
        %v378 = vld [vmem:[#allocation6 + $0x170] sm:$0xf]
        %v379 = vld [vmem:[#allocation6 + $0x174] sm:$0xf]
        %v380 = vld [vmem:[#allocation6 + $0x178] sm:$0xf]
        %v381 = vld [vmem:[#allocation6 + $0x17c] sm:$0xf]
        %v382 = vld [vmem:[#allocation6 + $0x180] sm:$0xf]
        %v383 = vld [vmem:[#allocation6 + $0x184] sm:$0xf]
        %v384 = vld [vmem:[#allocation6 + $0x188] sm:$0xf]
        %v385 = vld [vmem:[#allocation6 + $0x18c] sm:$0xf]
        %v386 = vld [vmem:[#allocation6 + $0x190] sm:$0xf]
        %v387 = vld [vmem:[#allocation6 + $0x194] sm:$0xf]
        %v388 = vld [vmem:[#allocation6 + $0x198] sm:$0xf]
        %v389 = vld [vmem:[#allocation6 + $0x19c] sm:$0xf]
        %v390 = vld [vmem:[#allocation6 + $0x1a0] sm:$0xf]
        %v391 = vld [vmem:[#allocation6 + $0x1a4] sm:$0xf]
        %v392 = vld [vmem:[#allocation6 + $0x1a8] sm:$0xf]
        %v393 = vld [vmem:[#allocation6 + $0x1ac] sm:$0xf]
        %v394 = vld [vmem:[#allocation6 + $0x1b0] sm:$0xf]
        %v395 = vld [vmem:[#allocation6 + $0x1b4] sm:$0xf]
        %v396 = vld [vmem:[#allocation6 + $0x1b8] sm:$0xf]
        %v397 = vld [vmem:[#allocation6 + $0x1bc] sm:$0xf]
        %v398 = vld [vmem:[#allocation6 + $0x1c0] sm:$0xf]
        %v399 = vld [vmem:[#allocation6 + $0x1c4] sm:$0xf]
        %v400 = vld [vmem:[#allocation6 + $0x1c8] sm:$0xf]
        %v401 = vld [vmem:[#allocation6 + $0x1cc] sm:$0xf]
        %v402 = vld [vmem:[#allocation6 + $0x1d0] sm:$0xf]
        %v403 = vld [vmem:[#allocation6 + $0x1d4] sm:$0xf]
        %v404 = vld [vmem:[#allocation6 + $0x1d8] sm:$0xf]
        %v405 = vld [vmem:[#allocation6 + $0x1dc] sm:$0xf]
        %v406 = vld [vmem:[#allocation6 + $0x1e0] sm:$0xf]
        %v407 = vld [vmem:[#allocation6 + $0x1e4] sm:$0xf]
        %v408 = vld [vmem:[#allocation6 + $0x1e8] sm:$0xf]
        %v409 = vld [vmem:[#allocation6 + $0x1ec] sm:$0xf]
        %v410 = vld [vmem:[#allocation6 + $0x1f0] sm:$0xf]
        %v411 = vld [vmem:[#allocation6 + $0x1f4] sm:$0xf]
        %v412 = vld [vmem:[#allocation6 + $0x1f8] sm:$0xf]
        %v413 = vld [vmem:[#allocation6 + $0x1fc] sm:$0xf]
        %v446 = vunpack.c.l.b16 %v254
        %v447 = vunpack.c.h.b16 %v254
        %v448 = vunpack.c.l.b16 %v255
        %v449 = vunpack.c.h.b16 %v255
        %v450 = vunpack.c.l.b16 %v256
        %v451 = vunpack.c.h.b16 %v256
        %v452 = vunpack.c.l.b16 %v257
        %v453 = vunpack.c.h.b16 %v257
        %v454 = vunpack.c.l.b16 %v258
        %v455 = vunpack.c.h.b16 %v258
        %v456 = vunpack.c.l.b16 %v259
        %v457 = vunpack.c.h.b16 %v259
        %v458 = vunpack.c.l.b16 %v260
        %v459 = vunpack.c.h.b16 %v260
        %v460 = vunpack.c.l.b16 %v261
        %v461 = vunpack.c.h.b16 %v261
        %v462 = vunpack.c.l.b16 %v262
        %v463 = vunpack.c.h.b16 %v262
        %v464 = vunpack.c.l.b16 %v263
        %v465 = vunpack.c.h.b16 %v263
        %v466 = vunpack.c.l.b16 %v264
        %v467 = vunpack.c.h.b16 %v264
        %v468 = vunpack.c.l.b16 %v265
        %v469 = vunpack.c.h.b16 %v265
        %v470 = vunpack.c.l.b16 %v266
        %v471 = vunpack.c.h.b16 %v266
        %v472 = vunpack.c.l.b16 %v267
        %v473 = vunpack.c.h.b16 %v267
        %v474 = vunpack.c.l.b16 %v268
        %v475 = vunpack.c.h.b16 %v268
        %v476 = vunpack.c.l.b16 %v269
        %v477 = vunpack.c.h.b16 %v269
        %v478 = vunpack.c.l.b16 %v270
        %v479 = vunpack.c.h.b16 %v270
        %v480 = vunpack.c.l.b16 %v271
        %v481 = vunpack.c.h.b16 %v271
        %v482 = vunpack.c.l.b16 %v272
        %v483 = vunpack.c.h.b16 %v272
        %v484 = vunpack.c.l.b16 %v273
        %v485 = vunpack.c.h.b16 %v273
        %v486 = vunpack.c.l.b16 %v274
        %v487 = vunpack.c.h.b16 %v274
        %v488 = vunpack.c.l.b16 %v275
        %v489 = vunpack.c.h.b16 %v275
        %v490 = vunpack.c.l.b16 %v276
        %v491 = vunpack.c.h.b16 %v276
        %v492 = vunpack.c.l.b16 %v277
        %v493 = vunpack.c.h.b16 %v277
        %v494 = vunpack.c.l.b16 %v278
        %v495 = vunpack.c.h.b16 %v278
        %v496 = vunpack.c.l.b16 %v279
        %v497 = vunpack.c.h.b16 %v279
        %v498 = vunpack.c.l.b16 %v280
        %v499 = vunpack.c.h.b16 %v280
        %v500 = vunpack.c.l.b16 %v281
        %v501 = vunpack.c.h.b16 %v281
        %v502 = vunpack.c.l.b16 %v282
        %v503 = vunpack.c.h.b16 %v282
        %v504 = vunpack.c.l.b16 %v283
        %v505 = vunpack.c.h.b16 %v283
        %v506 = vunpack.c.l.b16 %v284
        %v507 = vunpack.c.h.b16 %v284
        %v508 = vunpack.c.l.b16 %v285
        %v509 = vunpack.c.h.b16 %v285
        %v510 = vpack.c.b16 %v454, %v446
        %v511 = vpack.c.b16 %v455, %v447
        %v512 = vpack.c.b16 %v456, %v448
        %v513 = vpack.c.b16 %v457, %v449
        %v514 = vpack.c.b16 %v458, %v450
        %v515 = vpack.c.b16 %v459, %v451
        %v516 = vpack.c.b16 %v460, %v452
        %v517 = vpack.c.b16 %v461, %v453
        %v518 = vpack.c.b16 %v470, %v462
        %v519 = vpack.c.b16 %v471, %v463
        %v520 = vpack.c.b16 %v472, %v464
        %v521 = vpack.c.b16 %v473, %v465
        %v522 = vpack.c.b16 %v474, %v466
        %v523 = vpack.c.b16 %v475, %v467
        %v524 = vpack.c.b16 %v476, %v468
        %v525 = vpack.c.b16 %v477, %v469
        %v526 = vpack.c.b16 %v486, %v478
        %v527 = vpack.c.b16 %v487, %v479
        %v528 = vpack.c.b16 %v488, %v480
        %v529 = vpack.c.b16 %v489, %v481
        %v530 = vpack.c.b16 %v490, %v482
        %v531 = vpack.c.b16 %v491, %v483
        %v532 = vpack.c.b16 %v492, %v484
        %v533 = vpack.c.b16 %v493, %v485
        %v534 = vpack.c.b16 %v502, %v494
        %v535 = vpack.c.b16 %v503, %v495
        %v536 = vpack.c.b16 %v504, %v496
        %v537 = vpack.c.b16 %v505, %v497
        %v538 = vpack.c.b16 %v506, %v498
        %v539 = vpack.c.b16 %v507, %v499
        %v540 = vpack.c.b16 %v508, %v500
        %v541 = vpack.c.b16 %v509, %v501
        %v702 = vunpack.c.l.b16 %v286
        %v703 = vunpack.c.l.b16 %v287
        %v704 = vunpack.c.l.b16 %v288
        %v705 = vunpack.c.l.b16 %v289
        %v706 = vunpack.c.l.b16 %v290
        %v707 = vunpack.c.l.b16 %v291
        %v708 = vunpack.c.l.b16 %v292
        %v709 = vunpack.c.l.b16 %v293
        %v710 = vunpack.c.l.b16 %v294
        %v711 = vunpack.c.l.b16 %v295
        %v712 = vunpack.c.l.b16 %v296
        %v713 = vunpack.c.l.b16 %v297
        %v714 = vunpack.c.l.b16 %v298
        %v715 = vunpack.c.l.b16 %v299
        %v716 = vunpack.c.l.b16 %v300
        %v717 = vunpack.c.l.b16 %v301
        %v718 = vunpack.c.l.b16 %v302
        %v719 = vunpack.c.l.b16 %v303
        %v720 = vunpack.c.l.b16 %v304
        %v721 = vunpack.c.l.b16 %v305
        %v722 = vunpack.c.l.b16 %v306
        %v723 = vunpack.c.l.b16 %v307
        %v724 = vunpack.c.l.b16 %v308
        %v725 = vunpack.c.l.b16 %v309
        %v726 = vunpack.c.l.b16 %v310
        %v727 = vunpack.c.l.b16 %v311
        %v728 = vunpack.c.l.b16 %v312
        %v729 = vunpack.c.l.b16 %v313
        %v730 = vunpack.c.l.b16 %v314
        %v731 = vunpack.c.l.b16 %v315
        %v732 = vunpack.c.l.b16 %v316
        %v733 = vunpack.c.l.b16 %v317
        %v734 = vunpack.c.l.b16 %v318
        %v735 = vunpack.c.l.b16 %v319
        %v736 = vunpack.c.l.b16 %v320
        %v737 = vunpack.c.l.b16 %v321
        %v738 = vunpack.c.l.b16 %v322
        %v739 = vunpack.c.l.b16 %v323
        %v740 = vunpack.c.l.b16 %v324
        %v741 = vunpack.c.l.b16 %v325
        %v742 = vunpack.c.l.b16 %v326
        %v743 = vunpack.c.l.b16 %v327
        %v744 = vunpack.c.l.b16 %v328
        %v745 = vunpack.c.l.b16 %v329
        %v746 = vunpack.c.l.b16 %v330
        %v747 = vunpack.c.l.b16 %v331
        %v748 = vunpack.c.l.b16 %v332
        %v749 = vunpack.c.l.b16 %v333
        %v750 = vunpack.c.l.b16 %v334
        %v751 = vunpack.c.l.b16 %v335
        %v752 = vunpack.c.l.b16 %v336
        %v753 = vunpack.c.l.b16 %v337
        %v754 = vunpack.c.l.b16 %v338
        %v755 = vunpack.c.l.b16 %v339
        %v756 = vunpack.c.l.b16 %v340
        %v757 = vunpack.c.l.b16 %v341
        %v758 = vunpack.c.l.b16 %v342
        %v759 = vunpack.c.l.b16 %v343
        %v760 = vunpack.c.l.b16 %v344
        %v761 = vunpack.c.l.b16 %v345
        %v762 = vunpack.c.l.b16 %v346
        %v763 = vunpack.c.l.b16 %v347
        %v764 = vunpack.c.l.b16 %v348
        %v765 = vunpack.c.l.b16 %v349
        %v766 = vunpack.c.l.b16 %v350
        %v767 = vunpack.c.l.b16 %v351
        %v768 = vunpack.c.l.b16 %v352
        %v769 = vunpack.c.l.b16 %v353
        %v770 = vunpack.c.l.b16 %v354
        %v771 = vunpack.c.l.b16 %v355
        %v772 = vunpack.c.l.b16 %v356
        %v773 = vunpack.c.l.b16 %v357
        %v774 = vunpack.c.l.b16 %v358
        %v775 = vunpack.c.l.b16 %v359
        %v776 = vunpack.c.l.b16 %v360
        %v777 = vunpack.c.l.b16 %v361
        %v778 = vunpack.c.l.b16 %v362
        %v779 = vunpack.c.l.b16 %v363
        %v780 = vunpack.c.l.b16 %v364
        %v781 = vunpack.c.l.b16 %v365
        %v782 = vunpack.c.l.b16 %v366
        %v783 = vunpack.c.l.b16 %v367
        %v784 = vunpack.c.l.b16 %v368
        %v785 = vunpack.c.l.b16 %v369
        %v786 = vunpack.c.l.b16 %v370
        %v787 = vunpack.c.l.b16 %v371
        %v788 = vunpack.c.l.b16 %v372
        %v789 = vunpack.c.l.b16 %v373
        %v790 = vunpack.c.l.b16 %v374
        %v791 = vunpack.c.l.b16 %v375
        %v792 = vunpack.c.l.b16 %v376
        %v793 = vunpack.c.l.b16 %v377
        %v794 = vunpack.c.l.b16 %v378
        %v795 = vunpack.c.l.b16 %v379
        %v796 = vunpack.c.l.b16 %v380
        %v797 = vunpack.c.l.b16 %v381
        %v798 = vunpack.c.l.b16 %v382
        %v799 = vunpack.c.l.b16 %v383
        %v800 = vunpack.c.l.b16 %v384
        %v801 = vunpack.c.l.b16 %v385
        %v802 = vunpack.c.l.b16 %v386
        %v803 = vunpack.c.l.b16 %v387
        %v804 = vunpack.c.l.b16 %v388
        %v805 = vunpack.c.l.b16 %v389
        %v806 = vunpack.c.l.b16 %v390
        %v807 = vunpack.c.l.b16 %v391
        %v808 = vunpack.c.l.b16 %v392
        %v809 = vunpack.c.l.b16 %v393
        %v810 = vunpack.c.l.b16 %v394
        %v811 = vunpack.c.l.b16 %v395
        %v812 = vunpack.c.l.b16 %v396
        %v813 = vunpack.c.l.b16 %v397
        %v814 = vunpack.c.l.b16 %v398
        %v815 = vunpack.c.l.b16 %v399
        %v816 = vunpack.c.l.b16 %v400
        %v817 = vunpack.c.l.b16 %v401
        %v818 = vunpack.c.l.b16 %v402
        %v819 = vunpack.c.l.b16 %v403
        %v820 = vunpack.c.l.b16 %v404
        %v821 = vunpack.c.l.b16 %v405
        %v822 = vunpack.c.l.b16 %v406
        %v823 = vunpack.c.l.b16 %v407
        %v824 = vunpack.c.l.b16 %v408
        %v825 = vunpack.c.l.b16 %v409
        %v826 = vunpack.c.l.b16 %v410
        %v827 = vunpack.c.l.b16 %v411
        %v828 = vunpack.c.l.b16 %v412
        %v829 = vunpack.c.l.b16 %v413
        %v830 = vpack.c.b16 %v703, %v702
        %v831 = vpack.c.b16 %v705, %v704
        %v832 = vpack.c.b16 %v707, %v706
        %v833 = vpack.c.b16 %v709, %v708
        %v834 = vpack.c.b16 %v711, %v710
        %v835 = vpack.c.b16 %v713, %v712
        %v836 = vpack.c.b16 %v715, %v714
        %v837 = vpack.c.b16 %v717, %v716
        %v838 = vpack.c.b16 %v719, %v718
        %v839 = vpack.c.b16 %v721, %v720
        %v840 = vpack.c.b16 %v723, %v722
        %v841 = vpack.c.b16 %v725, %v724
        %v842 = vpack.c.b16 %v727, %v726
        %v843 = vpack.c.b16 %v729, %v728
        %v844 = vpack.c.b16 %v731, %v730
        %v845 = vpack.c.b16 %v733, %v732
        %v846 = vpack.c.b16 %v735, %v734
        %v847 = vpack.c.b16 %v737, %v736
        %v848 = vpack.c.b16 %v739, %v738
        %v849 = vpack.c.b16 %v741, %v740
        %v850 = vpack.c.b16 %v743, %v742
        %v851 = vpack.c.b16 %v745, %v744
        %v852 = vpack.c.b16 %v747, %v746
        %v853 = vpack.c.b16 %v749, %v748
        %v854 = vpack.c.b16 %v751, %v750
        %v855 = vpack.c.b16 %v753, %v752
        %v856 = vpack.c.b16 %v755, %v754
        %v857 = vpack.c.b16 %v757, %v756
        %v858 = vpack.c.b16 %v759, %v758
        %v859 = vpack.c.b16 %v761, %v760
        %v860 = vpack.c.b16 %v763, %v762
        %v861 = vpack.c.b16 %v765, %v764
        %v862 = vpack.c.b16 %v767, %v766
        %v863 = vpack.c.b16 %v769, %v768
        %v864 = vpack.c.b16 %v771, %v770
        %v865 = vpack.c.b16 %v773, %v772
        %v866 = vpack.c.b16 %v775, %v774
        %v867 = vpack.c.b16 %v777, %v776
        %v868 = vpack.c.b16 %v779, %v778
        %v869 = vpack.c.b16 %v781, %v780
        %v870 = vpack.c.b16 %v783, %v782
        %v871 = vpack.c.b16 %v785, %v784
        %v872 = vpack.c.b16 %v787, %v786
        %v873 = vpack.c.b16 %v789, %v788
        %v874 = vpack.c.b16 %v791, %v790
        %v875 = vpack.c.b16 %v793, %v792
        %v876 = vpack.c.b16 %v795, %v794
        %v877 = vpack.c.b16 %v797, %v796
        %v878 = vpack.c.b16 %v799, %v798
        %v879 = vpack.c.b16 %v801, %v800
        %v880 = vpack.c.b16 %v803, %v802
        %v881 = vpack.c.b16 %v805, %v804
        %v882 = vpack.c.b16 %v807, %v806
        %v883 = vpack.c.b16 %v809, %v808
        %v884 = vpack.c.b16 %v811, %v810
        %v885 = vpack.c.b16 %v813, %v812
        %v886 = vpack.c.b16 %v815, %v814
        %v887 = vpack.c.b16 %v817, %v816
        %v888 = vpack.c.b16 %v819, %v818
        %v889 = vpack.c.b16 %v821, %v820
        %v890 = vpack.c.b16 %v823, %v822
        %v891 = vpack.c.b16 %v825, %v824
        %v892 = vpack.c.b16 %v827, %v826
        %v893 = vpack.c.b16 %v829, %v828
        %958 = vmatprep.subr.bf16.mxu0 0
        %959 = vmatpush1.bf16.msra.mxu0 %v830
        %960 = vmatprep.subr.bf16.mxu0 0
        %961 = vmatpush1.bf16.msra.mxu0 %v831
        %962 = vmatprep.subr.bf16.mxu0 0
        %963 = vmatpush1.bf16.msra.mxu0 %v832
        %964 = vmatprep.subr.bf16.mxu0 0
        %965 = vmatpush1.bf16.msra.mxu0 %v833
        %966 = vmatprep.subr.bf16.mxu0 0
        %967 = vmatpush1.bf16.msra.mxu0 %v834
        %968 = vmatprep.subr.bf16.mxu0 0
        %969 = vmatpush1.bf16.msra.mxu0 %v835
        %970 = vmatprep.subr.bf16.mxu0 0
        %971 = vmatpush1.bf16.msra.mxu0 %v836
        %972 = vmatprep.subr.bf16.mxu0 0
        %973 = vmatpush1.bf16.msra.mxu0 %v837
        %974 = vmatprep.subr.bf16.mxu0 0
        %975 = vmatpush1.bf16.msra.mxu0 %v838
        %976 = vmatprep.subr.bf16.mxu0 0
        %977 = vmatpush1.bf16.msra.mxu0 %v839
        %978 = vmatprep.subr.bf16.mxu0 0
        %979 = vmatpush1.bf16.msra.mxu0 %v840
        %980 = vmatprep.subr.bf16.mxu0 0
        %981 = vmatpush1.bf16.msra.mxu0 %v841
        %982 = vmatprep.subr.bf16.mxu0 0
        %983 = vmatpush1.bf16.msra.mxu0 %v842
        %984 = vmatprep.subr.bf16.mxu0 0
        %985 = vmatpush1.bf16.msra.mxu0 %v843
        %986 = vmatprep.subr.bf16.mxu0 0
        %987 = vmatpush1.bf16.msra.mxu0 %v844
        %988 = vmatprep.subr.bf16.mxu0 0
        %989 = vmatpush1.bf16.msra.mxu0 %v845
        %990 = vmatprep.mubr.bf16.mxu0 %v511
        %991 = vmatmul.mubr.bf16.gmra.mrb[0].mxu0 %v510
        %v992 = vpop.f32.mrb[0].mxu0
        %v993 = vadd.f32 0.0, %v992
        %v994 = vpop.f32.mrb[0].mxu0
        %v995 = vpop.f32.mrb[0].mxu0
        %v996 = vadd.f32 0.0, %v995
        %v997 = vpop.f32.mrb[0].mxu0
        %998 = vmatprep.mubr.bf16.mxu0 %v519
        %999 = vmatmul.mubr.bf16.gmra.mrb[0].mxu0 %v518
        %v1000 = vpop.f32.mrb[0].mxu0
        %v1001 = vadd.f32 0.0, %v1000
        %v1002 = vpop.f32.mrb[0].mxu0
        %v1003 = vpop.f32.mrb[0].mxu0
        %v1004 = vadd.f32 0.0, %v1003
        %v1005 = vpop.f32.mrb[0].mxu0
        %1006 = vmatprep.mubr.bf16.mxu0 %v527
        %1007 = vmatmul.mubr.bf16.gmra.mrb[0].mxu0 %v526
        %v1008 = vpop.f32.mrb[0].mxu0
        %v1009 = vadd.f32 0.0, %v1008
        %v1010 = vpop.f32.mrb[0].mxu0
        %v1011 = vpop.f32.mrb[0].mxu0
        %v1012 = vadd.f32 0.0, %v1011
        %v1013 = vpop.f32.mrb[0].mxu0
        %1014 = vmatprep.mubr.bf16.mxu0 %v535
        %1015 = vmatmul.mubr.bf16.gmra.mrb[0].mxu0 %v534
        %v1016 = vpop.f32.mrb[0].mxu0
        %v1017 = vadd.f32 0.0, %v1016
        %v1018 = vpop.f32.mrb[0].mxu0
        %v1019 = vpop.f32.mrb[0].mxu0
        %v1020 = vadd.f32 0.0, %v1019
        %v1021 = vpop.f32.mrb[0].mxu0
        %1022 = vdwg.mxu0
        %1023 = vmatprep.subr.bf16.mxu0 0
        %1024 = vmatpush1.bf16.msra.mxu0 %v846
        %1025 = vmatprep.subr.bf16.mxu0 0
        %1026 = vmatpush1.bf16.msra.mxu0 %v847
        %1027 = vmatprep.subr.bf16.mxu0 0
        %1028 = vmatpush1.bf16.msra.mxu0 %v848
        %1029 = vmatprep.subr.bf16.mxu0 0
        %1030 = vmatpush1.bf16.msra.mxu0 %v849
        %1031 = vmatprep.subr.bf16.mxu0 0
        %1032 = vmatpush1.bf16.msra.mxu0 %v850
        %1033 = vmatprep.subr.bf16.mxu0 0
        %1034 = vmatpush1.bf16.msra.mxu0 %v851
        %1035 = vmatprep.subr.bf16.mxu0 0
        %1036 = vmatpush1.bf16.msra.mxu0 %v852
        %1037 = vmatprep.subr.bf16.mxu0 0
        %1038 = vmatpush1.bf16.msra.mxu0 %v853
        %1039 = vmatprep.subr.bf16.mxu0 0
        %1040 = vmatpush1.bf16.msra.mxu0 %v854
        %1041 = vmatprep.subr.bf16.mxu0 0
        %1042 = vmatpush1.bf16.msra.mxu0 %v855
        %1043 = vmatprep.subr.bf16.mxu0 0
        %1044 = vmatpush1.bf16.msra.mxu0 %v856
        %1045 = vmatprep.subr.bf16.mxu0 0
        %1046 = vmatpush1.bf16.msra.mxu0 %v857
        %1047 = vmatprep.subr.bf16.mxu0 0
        %1048 = vmatpush1.bf16.msra.mxu0 %v858
        %1049 = vmatprep.subr.bf16.mxu0 0
        %1050 = vmatpush1.bf16.msra.mxu0 %v859
        %1051 = vmatprep.subr.bf16.mxu0 0
        %1052 = vmatpush1.bf16.msra.mxu0 %v860
        %1053 = vmatprep.subr.bf16.mxu0 0
        %1054 = vmatpush1.bf16.msra.mxu0 %v861
        %1055 = vmatprep.mubr.bf16.mxu0 %v513
        %1056 = vmatmul.mubr.bf16.gmra.mrb[0].mxu0 %v512
        %v1057 = vpop.f32.mrb[0].mxu0
        %v1058 = vadd.f32 %v993, %v1057
        %v1059 = vpop.f32.mrb[0].mxu0
        %v1060 = vpop.f32.mrb[0].mxu0
        %v1061 = vadd.f32 %v996, %v1060
        %v1062 = vpop.f32.mrb[0].mxu0
        %1063 = vmatprep.mubr.bf16.mxu0 %v521
        %1064 = vmatmul.mubr.bf16.gmra.mrb[0].mxu0 %v520
        %v1065 = vpop.f32.mrb[0].mxu0
        %v1066 = vadd.f32 %v1001, %v1065
        %v1067 = vpop.f32.mrb[0].mxu0
        %v1068 = vpop.f32.mrb[0].mxu0
        %v1069 = vadd.f32 %v1004, %v1068
        %v1070 = vpop.f32.mrb[0].mxu0
        %1071 = vmatprep.mubr.bf16.mxu0 %v529
        %1072 = vmatmul.mubr.bf16.gmra.mrb[0].mxu0 %v528
        %v1073 = vpop.f32.mrb[0].mxu0
        %v1074 = vadd.f32 %v1009, %v1073
        %v1075 = vpop.f32.mrb[0].mxu0
        %v1076 = vpop.f32.mrb[0].mxu0
        %v1077 = vadd.f32 %v1012, %v1076
        %v1078 = vpop.f32.mrb[0].mxu0
        %1079 = vmatprep.mubr.bf16.mxu0 %v537
        %1080 = vmatmul.mubr.bf16.gmra.mrb[0].mxu0 %v536
        %v1081 = vpop.f32.mrb[0].mxu0
        %v1082 = vadd.f32 %v1017, %v1081
        %v1083 = vpop.f32.mrb[0].mxu0
        %v1084 = vpop.f32.mrb[0].mxu0
        %v1085 = vadd.f32 %v1020, %v1084
        %v1086 = vpop.f32.mrb[0].mxu0
        %1087 = vdwg.mxu0
        %1088 = vmatprep.subr.bf16.mxu0 0
        %1089 = vmatpush1.bf16.msra.mxu0 %v862
        %1090 = vmatprep.subr.bf16.mxu0 0
        %1091 = vmatpush1.bf16.msra.mxu0 %v863
        %1092 = vmatprep.subr.bf16.mxu0 0
        %1093 = vmatpush1.bf16.msra.mxu0 %v864
        %1094 = vmatprep.subr.bf16.mxu0 0
        %1095 = vmatpush1.bf16.msra.mxu0 %v865
        %1096 = vmatprep.subr.bf16.mxu0 0
        %1097 = vmatpush1.bf16.msra.mxu0 %v866
        %1098 = vmatprep.subr.bf16.mxu0 0
        %1099 = vmatpush1.bf16.msra.mxu0 %v867
        %1100 = vmatprep.subr.bf16.mxu0 0
        %1101 = vmatpush1.bf16.msra.mxu0 %v868
        %1102 = vmatprep.subr.bf16.mxu0 0
        %1103 = vmatpush1.bf16.msra.mxu0 %v869
        %1104 = vmatprep.subr.bf16.mxu0 0
        %1105 = vmatpush1.bf16.msra.mxu0 %v870
        %1106 = vmatprep.subr.bf16.mxu0 0
        %1107 = vmatpush1.bf16.msra.mxu0 %v871
        %1108 = vmatprep.subr.bf16.mxu0 0
        %1109 = vmatpush1.bf16.msra.mxu0 %v872
        %1110 = vmatprep.subr.bf16.mxu0 0
        %1111 = vmatpush1.bf16.msra.mxu0 %v873
        %1112 = vmatprep.subr.bf16.mxu0 0
        %1113 = vmatpush1.bf16.msra.mxu0 %v874
        %1114 = vmatprep.subr.bf16.mxu0 0
        %1115 = vmatpush1.bf16.msra.mxu0 %v875
        %1116 = vmatprep.subr.bf16.mxu0 0
        %1117 = vmatpush1.bf16.msra.mxu0 %v876
        %1118 = vmatprep.subr.bf16.mxu0 0
        %1119 = vmatpush1.bf16.msra.mxu0 %v877
        %1120 = vmatprep.mubr.bf16.mxu0 %v515
        %1121 = vmatmul.mubr.bf16.gmra.mrb[0].mxu0 %v514
        %v1122 = vpop.f32.mrb[0].mxu0
        %v1123 = vadd.f32 %v1058, %v1122
        %v1124 = vpop.f32.mrb[0].mxu0
        %v1125 = vpop.f32.mrb[0].mxu0
        %v1126 = vadd.f32 %v1061, %v1125
        %v1127 = vpop.f32.mrb[0].mxu0
        %1128 = vmatprep.mubr.bf16.mxu0 %v523
        %1129 = vmatmul.mubr.bf16.gmra.mrb[0].mxu0 %v522
        %v1130 = vpop.f32.mrb[0].mxu0
        %v1131 = vadd.f32 %v1066, %v1130
        %v1132 = vpop.f32.mrb[0].mxu0
        %v1133 = vpop.f32.mrb[0].mxu0
        %v1134 = vadd.f32 %v1069, %v1133
        %v1135 = vpop.f32.mrb[0].mxu0
        %1136 = vmatprep.mubr.bf16.mxu0 %v531
        %1137 = vmatmul.mubr.bf16.gmra.mrb[0].mxu0 %v530
        %v1138 = vpop.f32.mrb[0].mxu0
        %v1139 = vadd.f32 %v1074, %v1138
        %v1140 = vpop.f32.mrb[0].mxu0
        %v1141 = vpop.f32.mrb[0].mxu0
        %v1142 = vadd.f32 %v1077, %v1141
        %v1143 = vpop.f32.mrb[0].mxu0
        %1144 = vmatprep.mubr.bf16.mxu0 %v539
        %1145 = vmatmul.mubr.bf16.gmra.mrb[0].mxu0 %v538
        %v1146 = vpop.f32.mrb[0].mxu0
        %v1147 = vadd.f32 %v1082, %v1146
        %v1148 = vpop.f32.mrb[0].mxu0
        %v1149 = vpop.f32.mrb[0].mxu0
        %v1150 = vadd.f32 %v1085, %v1149
        %v1151 = vpop.f32.mrb[0].mxu0
        %1152 = vdwg.mxu0
        %1153 = vmatprep.subr.bf16.mxu0 0
        %1154 = vmatpush1.bf16.msra.mxu0 %v878
        %1155 = vmatprep.subr.bf16.mxu0 0
        %1156 = vmatpush1.bf16.msra.mxu0 %v879
        %1157 = vmatprep.subr.bf16.mxu0 0
        %1158 = vmatpush1.bf16.msra.mxu0 %v880
        %1159 = vmatprep.subr.bf16.mxu0 0
        %1160 = vmatpush1.bf16.msra.mxu0 %v881
        %1161 = vmatprep.subr.bf16.mxu0 0
        %1162 = vmatpush1.bf16.msra.mxu0 %v882
        %1163 = vmatprep.subr.bf16.mxu0 0
        %1164 = vmatpush1.bf16.msra.mxu0 %v883
        %1165 = vmatprep.subr.bf16.mxu0 0
        %1166 = vmatpush1.bf16.msra.mxu0 %v884
        %1167 = vmatprep.subr.bf16.mxu0 0
        %1168 = vmatpush1.bf16.msra.mxu0 %v885
        %1169 = vmatprep.subr.bf16.mxu0 0
        %1170 = vmatpush1.bf16.msra.mxu0 %v886
        %1171 = vmatprep.subr.bf16.mxu0 0
        %1172 = vmatpush1.bf16.msra.mxu0 %v887
        %1173 = vmatprep.subr.bf16.mxu0 0
        %1174 = vmatpush1.bf16.msra.mxu0 %v888
        %1175 = vmatprep.subr.bf16.mxu0 0
        %1176 = vmatpush1.bf16.msra.mxu0 %v889
        %1177 = vmatprep.subr.bf16.mxu0 0
        %1178 = vmatpush1.bf16.msra.mxu0 %v890
        %1179 = vmatprep.subr.bf16.mxu0 0
        %1180 = vmatpush1.bf16.msra.mxu0 %v891
        %1181 = vmatprep.subr.bf16.mxu0 0
        %1182 = vmatpush1.bf16.msra.mxu0 %v892
        %1183 = vmatprep.subr.bf16.mxu0 0
        %1184 = vmatpush1.bf16.msra.mxu0 %v893
        %1185 = vmatprep.mubr.bf16.mxu0 %v517
        %1186 = vmatmul.mubr.bf16.gmra.mrb[0].mxu0 %v516
        %v1187 = vpop.f32.mrb[0].mxu0
        %v1188 = vadd.f32 %v1123, %v1187
        %v1189 = vpop.f32.mrb[0].mxu0
        %v1190 = vpop.f32.mrb[0].mxu0
        %v1191 = vadd.f32 %v1126, %v1190
        %v1192 = vpop.f32.mrb[0].mxu0
        %1193 = vmatprep.mubr.bf16.mxu0 %v525
        %1194 = vmatmul.mubr.bf16.gmra.mrb[0].mxu0 %v524
        %v1195 = vpop.f32.mrb[0].mxu0
        %v1196 = vadd.f32 %v1131, %v1195
        %v1197 = vpop.f32.mrb[0].mxu0
        %v1198 = vpop.f32.mrb[0].mxu0
        %v1199 = vadd.f32 %v1134, %v1198
        %v1200 = vpop.f32.mrb[0].mxu0
        %1201 = vmatprep.mubr.bf16.mxu0 %v533
        %1202 = vmatmul.mubr.bf16.gmra.mrb[0].mxu0 %v532
        %v1203 = vpop.f32.mrb[0].mxu0
        %v1204 = vadd.f32 %v1139, %v1203
        %v1205 = vpop.f32.mrb[0].mxu0
        %v1206 = vpop.f32.mrb[0].mxu0
        %v1207 = vadd.f32 %v1142, %v1206
        %v1208 = vpop.f32.mrb[0].mxu0
        %1209 = vmatprep.mubr.bf16.mxu0 %v541
        %1210 = vmatmul.mubr.bf16.gmra.mrb[0].mxu0 %v540
        %v1211 = vpop.f32.mrb[0].mxu0
        %v1212 = vadd.f32 %v1147, %v1211
        %v1213 = vpop.f32.mrb[0].mxu0
        %v1214 = vpop.f32.mrb[0].mxu0
        %v1215 = vadd.f32 %v1150, %v1214
        %v1216 = vpop.f32.mrb[0].mxu0
        %1217 = vdwg.mxu0
        %v1218 = vadd.f32 %v246, %v1188
        %v1219 = vadd.f32 %v247, %v1191
        %v1220 = vadd.f32 %v248, %v1196
        %v1221 = vadd.f32 %v249, %v1199
        %v1222 = vadd.f32 %v250, %v1204
        %v1223 = vadd.f32 %v251, %v1207
        %v1224 = vadd.f32 %v252, %v1212
        %v1225 = vadd.f32 %v253, %v1215
        %1226 = vst [vmem:[#allocation2] sm:$0xff] %v1218
        %1227 = vst [vmem:[#allocation2 + $0x8] sm:$0xff] %v1219
        %1228 = vst [vmem:[#allocation2 + $0x10] sm:$0xff] %v1220
        %1229 = vst [vmem:[#allocation2 + $0x18] sm:$0xff] %v1221
        %1230 = vst [vmem:[#allocation2 + $0x20] sm:$0xff] %v1222
        %1231 = vst [vmem:[#allocation2 + $0x28] sm:$0xff] %v1223
        %1232 = vst [vmem:[#allocation2 + $0x30] sm:$0xff] %v1224
        %1233 = vst [vmem:[#allocation2 + $0x38] sm:$0xff] %v1225
        // Predicated region
        $region45: #{tpu_custom_call.1} parent=31 // pred_check
          %p1234 = pneg %p234
        $region46: #{tpu_custom_call.1} parent=31 // pred_check_branch
          %1236 = sbr.rel (%p1234) target = $region48
        $region47: #{tpu_custom_call.1} parent=31 // pred_region
          %v1237 = vld [vmem:[#allocation2] sm:$0xff]
          %v1238 = vld [vmem:[#allocation2 + $0x8] sm:$0xff]
          %v1239 = vld [vmem:[#allocation2 + $0x10] sm:$0xff]
          %v1240 = vld [vmem:[#allocation2 + $0x18] sm:$0xff]
          %v1241 = vld [vmem:[#allocation2 + $0x20] sm:$0xff]
          %v1242 = vld [vmem:[#allocation2 + $0x28] sm:$0xff]
          %v1243 = vld [vmem:[#allocation2 + $0x30] sm:$0xff]
          %v1244 = vld [vmem:[#allocation2 + $0x38] sm:$0xff]
          %v1245 = vld [vmem:[%s2] sm:$0x1]
          %v1247 = vlaneseq
          %v1248 = vshrl.u32 %v1247, 7
          %v1249 = vsub.s32 0, %v1248
          %v1250 = vrot.slane %v1245, %v1249
          %v1252 = vadd.f32 %v1237, %v1250
          %v1253 = vadd.f32 %v1238, %v1250
          %v1254 = vadd.f32 %v1239, %v1250
          %v1255 = vadd.f32 %v1240, %v1250
          %v1256 = vadd.f32 %v1241, %v1250
          %v1257 = vadd.f32 %v1242, %v1250
          %v1258 = vadd.f32 %v1243, %v1250
          %v1259 = vadd.f32 %v1244, %v1250
          %v1260 = vxor.u32 %v1252, 2147483648
          %v1261 = vxor.u32 %v1253, 2147483648
          %v1262 = vxor.u32 %v1254, 2147483648
          %v1263 = vxor.u32 %v1255, 2147483648
          %v1264 = vxor.u32 %v1256, 2147483648
          %v1265 = vxor.u32 %v1257, 2147483648
          %v1266 = vxor.u32 %v1258, 2147483648
          %v1267 = vxor.u32 %v1259, 2147483648
          %v1268 = vmul.f32 %v1260, 1.442695
          %v1269 = vpow.pop %v1268
          %v1270 = vmul.f32 %v1261, 1.442695
          %v1271 = vpow.pop %v1270
          %v1272 = vmul.f32 %v1262, 1.442695
          %v1273 = vpow.pop %v1272
          %v1274 = vmul.f32 %v1263, 1.442695
          %v1275 = vpow.pop %v1274
          %v1276 = vmul.f32 %v1264, 1.442695
          %v1277 = vpow.pop %v1276
          %v1278 = vmul.f32 %v1265, 1.442695
          %v1279 = vpow.pop %v1278
          %v1280 = vmul.f32 %v1266, 1.442695
          %v1281 = vpow.pop %v1280
          %v1282 = vmul.f32 %v1267, 1.442695
          %v1283 = vpow.pop %v1282
          %v1284 = vadd.f32 %v1269, 1.0
          %v1285 = vadd.f32 %v1271, 1.0
          %v1286 = vadd.f32 %v1273, 1.0
          %v1287 = vadd.f32 %v1275, 1.0
          %v1288 = vadd.f32 %v1277, 1.0
          %v1289 = vadd.f32 %v1279, 1.0
          %v1290 = vadd.f32 %v1281, 1.0
          %v1291 = vadd.f32 %v1283, 1.0
          %v1292 = vrcp.pop %v1284
          %v1293 = vmul.f32 1.0, %v1292
          %v1294 = vrcp.pop %v1285
          %v1295 = vmul.f32 1.0, %v1294
          %v1296 = vrcp.pop %v1286
          %v1297 = vmul.f32 1.0, %v1296
          %v1298 = vrcp.pop %v1287
          %v1299 = vmul.f32 1.0, %v1298
          %v1300 = vrcp.pop %v1288
          %v1301 = vmul.f32 1.0, %v1300
          %v1302 = vrcp.pop %v1289
          %v1303 = vmul.f32 1.0, %v1302
          %v1304 = vrcp.pop %v1290
          %v1305 = vmul.f32 1.0, %v1304
          %v1306 = vrcp.pop %v1291
          %v1307 = vmul.f32 1.0, %v1306
          %v1308 = vpack.c.bf16 %v1295, %v1293
          %v1309 = vpack.c.bf16 %v1299, %v1297
          %v1310 = vpack.c.bf16 %v1303, %v1301
          %v1311 = vpack.c.bf16 %v1307, %v1305
          %v1316 = vunpack.c.l.b16 %v1308
          %v1317 = vunpack.c.h.b16 %v1308
          %v1318 = vunpack.c.l.b16 %v1309
          %v1319 = vunpack.c.h.b16 %v1309
          %v1320 = vunpack.c.l.b16 %v1310
          %v1321 = vunpack.c.h.b16 %v1310
          %v1322 = vunpack.c.l.b16 %v1311
          %v1323 = vunpack.c.h.b16 %v1311
          %v1324 = vpack.c.b16 %v1316, %v1316
          %v1325 = vpack.c.b16 %v1317, %v1317
          %v1326 = vpack.c.b16 %v1318, %v1318
          %v1327 = vpack.c.b16 %v1319, %v1319
          %v1328 = vpack.c.b16 %v1320, %v1320
          %v1329 = vpack.c.b16 %v1321, %v1321
          %v1330 = vpack.c.b16 %v1322, %v1322
          %v1331 = vpack.c.b16 %v1323, %v1323
          %1340 = vst [vmem:[%s228] sm:$0xf] %v1324
          %1341 = vst [vmem:[%s228 + $0x4] sm:$0xf] %v1325
          %1342 = vst [vmem:[%s228 + $0x8] sm:$0xf] %v1326
          %1343 = vst [vmem:[%s228 + $0xc] sm:$0xf] %v1327
          %1344 = vst [vmem:[%s228 + $0x10] sm:$0xf] %v1328
          %1345 = vst [vmem:[%s228 + $0x14] sm:$0xf] %v1329
          %1346 = vst [vmem:[%s228 + $0x18] sm:$0xf] %v1330
          %1347 = vst [vmem:[%s228 + $0x1c] sm:$0xf] %v1331
        $region48: #{tpu_custom_call.1} parent=31 // pred_fallthru
          _
        %s1348 = sand.u32 %s116, 1
        %s1349 = scalar_lea.sflag [#allocation5], %s1348
        %s1350 = sand.u32 %s116, 1
        %s1351 = smul.addr %s1350, 32
        %s1352 = scalar_lea.vmem [#allocation8], %s1351
        // Predicated region
        $region49: #{tpu_custom_call.1} parent=31 // pred_check
          %p1353 = pneg %p126
        $region50: #{tpu_custom_call.1} parent=31 // pred_check_branch
          %1355 = sbr.rel (%p1353) target = $region52
        $region51: #{tpu_custom_call.1} parent=31 // pred_region
          %s1356 = smul.u32 8, %s25
          %s1358 = ssub.s32 512, 512
          %1359 = vsyncadd %s1349, %s1358
          %s1360 = smul.addr %s1356, 64
          %s1361 = scalar_lea.hbm %s3, %s1360
          %s1362 = sshll.u32 %s1352, 4
          %s1363 = int_to_ptr.vmem [resolvable:$true] %s1362
          %1368 = dma.vmem_to_hbm [thread:$0]  %s1363, 512, %s1361, %s1349, 64, 64, 4
        $region52: #{tpu_custom_call.1} parent=31 // pred_fallthru
          _
      $region32: #{tpu_custom_call.1} parent=5 // pred_fallthru
        _
      %p1369 = scmp.le.s32.totalorder 2, %s16
      // Predicated region
      $region53: #{tpu_custom_call.1} parent=5 // pred_check
        %p1370 = pneg %p1369
      $region54: #{tpu_custom_call.1} parent=5 // pred_check_branch
        %1372 = sbr.rel (%p1370) target = $region56
      $region55: #{tpu_custom_call.1} parent=5 // pred_region
        %s1373 = ssub.s32 %s16, 2
        // Predicated region
        $region57: #{tpu_custom_call.1} parent=55 // pred_check
          %p1374 = pneg %p132
        $region58: #{tpu_custom_call.1} parent=55 // pred_check_branch
          %1376 = sbr.rel (%p1374) target = $region60
        $region59: #{tpu_custom_call.1} parent=55 // pred_region
          %s1377 = sand.u32 %s117, 1
          %s1378 = scalar_lea.sflag [#allocation5], %s1377
          %s1379 = sand.u32 %s117, 1
          %s1380 = smul.addr %s1379, 32
          %s1381 = scalar_lea.vmem [#allocation8], %s1380
          %1382 = dma.done %s1378, 512
        $region60: #{tpu_custom_call.1} parent=55 // pred_fallthru
          _
      $region56: #{tpu_custom_call.1} parent=5 // pred_fallthru
        _
    $region6: #{tpu_custom_call.1} parent=1 // loop_footer
      %s20 = sadd.s32 1, %s16
    $region7: #{tpu_custom_call.1} parent=1 // loop_footer_branch
      %15 = sbr.rel target = $region3
    $region8: #{tpu_custom_call.1} parent=1 // loop_exit
      _
    %1383 = vsyncpa [#allocation4], 1
    %s1384 = scalar_lea.sflag [#allocation4], 1
    %1385 = vsyncpa %s1384, 1
    %1386 = vsyncpa [#allocation7], 1
    %1387 = vsyncpa [#allocation5], 1
    %s1388 = scalar_lea.sflag [#allocation5], 1
    %1389 = vsyncpa %s1388, 1

</llo_original>
